<compile_context>
chip_gen: v7x
topology: tpu7x:2x2x1
jax: 0.10.0
libtpu: 0.0.40
codegen_flags: <defaults>
</compile_context>

<pallas_src>
import numpy as np
import jax
import jax.numpy as jnp
from jax.experimental import pallas as pl
from jax.experimental.pallas import tpu as pltpu

# ------------------------ small synthetic configuration ---------------------
# Scaled-down analogue of CLIP-ViT-L/14-336 + Phi-3-V:
#   crop 336 -> 16, patch 14 -> 4, CLIP hidden (image_dim_out) 1024 -> 128,
#   projection / wte hidden 3072 -> 128, patch grid H 24 -> 4, "12" (H//2) -> 2.
CROP = 16
PATCH = 4
CIN = 3
HP = CROP // PATCH              # base_feat_height H
H2 = HP // 2                    # the hard-coded "12" of the real model
C_IMG = 128                     # image_dim_out C (lane-dense unfolded output)
CF = 4 * C_IMG                  # HD-folded feature width 4*C
KPATCH = CIN * PATCH * PATCH    # conv-as-GEMM contraction per patch
HIDDEN = 128                    # dim_projection == wte embedding dim
VOCAB = 32064
IMAGE_TOKEN_ID = 32044          # _IMAGE_TOKEN_ID
LN_EPS = 1e-5
_INV_SQRT2 = 0.7071067811865476
_SQRT_2_OVER_PI = 0.7978845608028654

# tiling knobs (256-row M tiles fill the v6e/v7x 256-wide MXU; v5e 128-wide also full)
ROWS_PER_CROP = HP * HP                       # unfolded patch rows per crop (576 at real dims)
PATCH_BLK_CROPS = 16                          # at real dims 1 crop/block already gives 576 rows
PATCH_BLK_ROWS = PATCH_BLK_CROPS * ROWS_PER_CROP   # = 256 here
TM_PROJ = 256                                 # projection row tile
TOK_TILE = 128                                # wte gather rows per grid step (128 DMAs in flight)
VMEM_LIMIT = 48 * 1024 * 1024                 # > 16/32 MiB defaults, < v7x 64 MiB physical


# ------------- kernel 1: unfolded patch embed + pos + pre-LN ----------------
def _patch_embed_kernel(x_ref, w_ref, pos_ref, g_ref, b_ref, o_ref):
    # x:   (RB, KPATCH)  bf16 patch pixels, rows already in HD 2x2-fold order
    # w:   (KPATCH, C)   bf16 conv-as-GEMM weight (resident, constant index_map)
    # pos: (RB, C)       f32 position embedding (one block's tile, resident)
    # g/b: (1, C)        f32 LayerNorm affine
    y = jnp.dot(x_ref[...], w_ref[...], preferred_element_type=jnp.float32) + pos_ref[...]
    mu = jnp.mean(y, axis=-1, keepdims=True)
    var = jnp.mean(y * y, axis=-1, keepdims=True) - mu * mu     # E[y^2]-mu^2: no d/d*d temporaries
    o_ref[...] = (y - mu) * jax.lax.rsqrt(var + LN_EPS) * g_ref[...] + b_ref[...]


def extract_patches_fold_order(pix):
    # (n, CIN, CROP, CROP) NCHW -> (n*HP*HP, KPATCH) bf16, rows in HD 2x2-fold order:
    # row (crop, fy, fx, dy, dx) is the patch at spatial (2*fy+dy, 2*fx+dx), flattened in
    # Conv2d (c, ph, pw) order.  The kernel output (rows, C) therefore becomes the
    # HD-transformed (n, H2*H2, 4*C) tensor via a zero-cost row-major reshape.
    n = pix.shape[0]
    x = pix.astype(jnp.bfloat16)                       # stage the transposed copy in bf16 (half HBM)
    x = x.reshape(n, CIN, H2, 2, PATCH, H2, 2, PATCH)
    x = jnp.transpose(x, (0, 2, 5, 3, 6, 1, 4, 7))     # n, fy, fx, dy, dx, c, ph, pw
    return x.reshape(n * HP * HP, KPATCH)
    # TODO(synk): fold the extraction into the kernel (Element index maps over NCHW pixels)
    #   to remove this extra HBM round trip entirely.


def pallas_patch_embed(pix_flat, p):
    n = pix_flat.shape[0]
    xf = extract_patches_fold_order(pix_flat)          # (n*HP*HP, KPATCH) bf16
    rows = xf.shape[0]
    rows_pad = pl.cdiv(rows, PATCH_BLK_ROWS) * PATCH_BLK_ROWS
    xf = jnp.pad(xf, ((0, rows_pad - rows), (0, 0)))
    out = pl.pallas_call(
        _patch_embed_kernel,
        out_shape=jax.ShapeDtypeStruct((rows_pad, C_IMG), jnp.float32),
        grid=(rows_pad // PATCH_BLK_ROWS,),
        in_specs=[
            pl.BlockSpec((PATCH_BLK_ROWS, KPATCH), lambda i: (i, 0)),
            pl.BlockSpec((KPATCH, C_IMG), lambda i: (0, 0)),          # resident bf16 conv weight
            pl.BlockSpec((PATCH_BLK_ROWS, C_IMG), lambda i: (0, 0)),  # pos tile reused every block
            pl.BlockSpec((1, C_IMG), lambda i: (0, 0)),
            pl.BlockSpec((1, C_IMG), lambda i: (0, 0)),
        ],
        out_specs=pl.BlockSpec((PATCH_BLK_ROWS, C_IMG), lambda i: (i, 0)),
        compiler_params=pltpu.CompilerParams(
            dimension_semantics=("parallel",),
            vmem_limit_bytes=VMEM_LIMIT),
    )(xf, p["w_pe_bf16"], p["pos_blk"], p["ln_g"], p["ln_b"])
    # rows are in fold order -> the HD 2x2 fold is a free (contiguous) reshape
    return out[:rows].reshape(n, H2 * H2, CF)


def extract_patches(pix):
    # raster-order patch unfold for the pure-jnp reference path (f32)
    n = pix.shape[0]
    x = pix.reshape(n, CIN, HP, PATCH, HP, PATCH)
    x = jnp.transpose(x, (0, 2, 4, 1, 3, 5))
    return x.reshape(n * HP * HP, KPATCH)


def jnp_patch_embed(pix_flat, p):
    # faithful f32 reference: conv-as-GEMM + pos + LN, then the HD 2x2 fold
    n = pix_flat.shape[0]
    patches = extract_patches(pix_flat)
    y = patches @ p["w_pe"] + jnp.tile(p["pos_emb"], (n, 1))
    mu = jnp.mean(y, axis=-1, keepdims=True)
    var = jnp.mean((y - mu) ** 2, axis=-1, keepdims=True)
    y = (y - mu) / jnp.sqrt(var + LN_EPS) * p["ln_g"] + p["ln_b"]
    y = y.reshape(n, H2, 2, H2, 2, C_IMG).transpose(0, 1, 3, 2, 4, 5)
    return y.reshape(n, H2 * H2, CF)


# ------------------------ kernel 2: img_projection MLP ----------------------
def _proj_kernel(x_ref, w1_ref, b1_ref, w2_ref, b2_ref, o_ref):
    # bf16 operands on the MXU, f32 accumulation / bias / GELU.
    h = jnp.dot(x_ref[...], w1_ref[...], preferred_element_type=jnp.float32) + b1_ref[...]
    # tanh-form GELU runs on the EUP slot; |err| vs nn.GELU's exact erf ~1e-3.
    h = 0.5 * h * (1.0 + jnp.tanh(_SQRT_2_OVER_PI * (h + 0.044715 * h * h * h)))
    o_ref[...] = jnp.dot(h.astype(jnp.bfloat16), w2_ref[...],
                         preferred_element_type=jnp.float32) + b2_ref[...]


def pallas_proj(x, p):
    # One call over ALL images' rows; 256-row tiles fill the MXU and shard across cores.
    t = x.shape[0]
    t_pad = pl.cdiv(t, TM_PROJ) * TM_PROJ
    x_p = jnp.pad(x.astype(jnp.bfloat16), ((0, t_pad - t), (0, 0)))
    out = pl.pallas_call(
        _proj_kernel,
        out_shape=jax.ShapeDtypeStruct((t_pad, HIDDEN), jnp.float32),
        grid=(t_pad // TM_PROJ,),
        in_specs=[
            pl.BlockSpec((TM_PROJ, CF), lambda i: (i, 0)),
            pl.BlockSpec((CF, HIDDEN), lambda i: (0, 0)),      # resident bf16 weights
            pl.BlockSpec((1, HIDDEN), lambda i: (0, 0)),
            pl.BlockSpec((HIDDEN, HIDDEN), lambda i: (0, 0)),
            pl.BlockSpec((1, HIDDEN), lambda i: (0, 0)),
        ],
        out_specs=pl.BlockSpec((TM_PROJ, HIDDEN), lambda i: (i, 0)),
        compiler_params=pltpu.CompilerParams(
            dimension_semantics=("parallel",),
            vmem_limit_bytes=VMEM_LIMIT),
    )(x_p, p["w1_bf16"], p["b1"], p["w2_bf16"], p["b2"])
    return out[:t]


def jnp_proj(x, p):
    h = x @ p["w1"] + p["b1"]
    h = 0.5 * h * (1.0 + jax.scipy.special.erf(h * _INV_SQRT2))   # exact-erf GELU, f32
    return h @ p["w2"] + p["b2"]


# ------------------------ kernel 3: wte embedding gather --------------------
def _wte_kernel(ids_ref, table_ref, out_ref, sem):
    # ids: (S_pad,) int32 in SMEM (scalar prefetch); table/out: raw HBM refs (pl.ANY).
    # Table rows are DMA'd HBM->HBM straight into the output (no VMEM bounce).
    # All TOK_TILE equal-sized row DMAs share one semaphore and are in flight together;
    # image-token rows are skipped (they get overwritten by the image scatter).
    base = pl.program_id(0) * TOK_TILE

    @pl.loop(0, TOK_TILE)
    def _start(j):
        tok = ids_ref[base + j]

        @pl.when(tok != IMAGE_TOKEN_ID)
        def _():
            pltpu.make_async_copy(table_ref.at[tok], out_ref.at[base + j], sem).start()

    @pl.loop(0, TOK_TILE)
    def _wait(j):
        tok = ids_ref[base + j]

        @pl.when(tok != IMAGE_TOKEN_ID)
        def _():
            pltpu.make_async_copy(table_ref.at[tok], out_ref.at[base + j], sem).wait()


def pallas_wte(ids, table):
    s = ids.shape[0]
    s_pad = pl.cdiv(s, TOK_TILE) * TOK_TILE
    ids_p = jnp.pad(ids, (0, s_pad - s))                 # pad tokens = 0 -> harmless gathers
    grid_spec = pltpu.PrefetchScalarGridSpec(
        num_scalar_prefetch=1,
        grid=(s_pad // TOK_TILE,),
        in_specs=[pl.BlockSpec(memory_space=pl.ANY)],    # wte table stays in HBM
        out_specs=pl.BlockSpec(memory_space=pl.ANY),     # gather straight into the HBM output
        scratch_shapes=[pltpu.SemaphoreType.DMA(())],    # one shared sem: equal-size row DMAs
    )
    out = pl.pallas_call(
        _wte_kernel,
        grid_spec=grid_spec,
        out_shape=jax.ShapeDtypeStruct((s_pad, HIDDEN), jnp.float32),
        compiler_params=pltpu.CompilerParams(dimension_semantics=("arbitrary",)),
    )(ids_p, table)
    return out[:s]


def jnp_wte(ids, table):
    return jnp.take(table, ids, axis=0)


# ------------------------ glue: forward (HD transform + merge) --------------
def forward(input_ids_np, pixel_values, image_sizes_np, p, *, feat_fn, proj_fn, wte_fn):
    """Mirrors Phi3HDImageEmbedding.forward (hd_transform_order='glb_sub')."""
    ids = np.asarray(input_ids_np)
    input_ids = ids.reshape(-1, ids.shape[-1])
    positions = np.argwhere(input_ids == IMAGE_TOKEN_ID)   # row-major, like torch.nonzero
    bs = pixel_values.shape[0]

    proj_all, num_img_tokens = None, []
    if len(positions) > 0:
        flat = pixel_values.reshape((-1,) + pixel_values.shape[2:])     # (bs*ncrops, CIN, CROP, CROP)
        feats = feat_fn(flat, p).reshape(bs, -1, H2 * H2, CF)           # HD-folded features
        out_imgs = []
        for _bs in range(bs):
            h = int(image_sizes_np[_bs, 0]) // CROP
            w = int(image_sizes_np[_bs, 1]) // CROP
            B_ = h * w
            # global image (features already folded to (H2, H2, 4C))
            glb = feats[_bs, 0].reshape(1, H2, H2, CF)
            glb = jnp.concatenate([glb, jnp.tile(p["sub_GN"], (1, H2, 1, 1))], axis=2).reshape(1, -1, CF)
            # sub (HD crop) images
            sub = feats[_bs, 1:1 + B_].reshape(1, h, w, H2, H2, CF)
            sub = sub.transpose(0, 1, 3, 2, 4, 5).reshape(1, h * H2, w * H2, CF)
            sub = jnp.concatenate([sub, jnp.tile(p["sub_GN"], (1, h * H2, 1, 1))], axis=2).reshape(1, -1, CF)
            out_img = jnp.concatenate([glb, p["glb_GN"], sub], axis=1)   # 'glb_sub'
            t = out_img.shape[1]
            assert t == (h * w + 1) * H2 * H2 + 1 + (h + 1) * H2
            out_imgs.append(out_img[0])
            num_img_tokens.append(t)
        # one batched projection over every image's rows (single pallas_call)
        proj_all = proj_fn(jnp.concatenate(out_imgs, axis=0), p)

    # module semantics: clamp_min_(0).clamp_max_(vocab_size)  (wte table has VOCAB+1 rows)
    ids_clamped = jnp.clip(jnp.asarray(input_ids, jnp.int32).reshape(-1), 0, VOCAB)
    hidden = wte_fn(ids_clamped, p["wte"]).reshape(input_ids.shape[0], input_ids.shape[1], HIDDEN)

    idx, off = 0, 0
    for cnt in num_img_tokens:
        r, c = int(positions[idx, 0]), int(positions[idx, 1])
        hidden = jax.lax.dynamic_update_slice(
            hidden, proj_all[off:off + cnt][None].astype(hidden.dtype), (r, c, 0))
        idx += cnt
        off += cnt
    # torch's .squeeze(0) is a no-op when the batch dim != 1
    return hidden[0] if hidden.shape[0] == 1 else hidden


# ------------------------ derived (repacked) kernel parameters --------------
def derive_kernel_params(p):
    q = dict(p)
    # bf16 MXU operands (f32 masters kept for the reference path)
    q["w_pe_bf16"] = p["w_pe"].astype(jnp.bfloat16)
    q["w1_bf16"] = p["w1"].astype(jnp.bfloat16)
    q["w2_bf16"] = p["w2"].astype(jnp.bfloat16)
    # position embedding reordered into HD 2x2-fold row order, tiled to one block
    pos_fold = (p["pos_emb"].reshape(H2, 2, H2, 2, C_IMG)
                .transpose(0, 2, 1, 3, 4).reshape(HP * HP, C_IMG))
    q["pos_blk"] = jnp.tile(pos_fold, (PATCH_BLK_CROPS, 1))
    return q


# ------------------------------------ main ----------------------------------
if __name__ == "__main__":
    key = jax.random.PRNGKey(0)
    ks = jax.random.split(key, 12)
    params = {
        "w_pe": jax.random.normal(ks[0], (KPATCH, C_IMG), jnp.float32) * 0.02,
        "pos_emb": jax.random.normal(ks[1], (HP * HP, C_IMG), jnp.float32) * 0.02,
        "ln_g": 1.0 + 0.1 * jax.random.normal(ks[2], (1, C_IMG), jnp.float32),
        "ln_b": 0.1 * jax.random.normal(ks[3], (1, C_IMG), jnp.float32),
        "glb_GN": jax.random.normal(ks[4], (1, 1, CF), jnp.float32) * 0.02,
        "sub_GN": jax.random.normal(ks[5], (1, 1, 1, CF), jnp.float32) * 0.02,
        "w1": jax.random.normal(ks[6], (CF, HIDDEN), jnp.float32) * 0.05,
        "b1": jax.random.normal(ks[7], (1, HIDDEN), jnp.float32) * 0.01,
        "w2": jax.random.normal(ks[8], (HIDDEN, HIDDEN), jnp.float32) * 0.05,
        "b2": jax.random.normal(ks[9], (1, HIDDEN), jnp.float32) * 0.01,
        # VOCAB+1 rows so the module's clamp_max_(vocab_size) index stays in range.
        "wte": jax.random.normal(ks[10], (VOCAB + 1, HIDDEN), jnp.float32) * 0.02,
    }
    params = derive_kernel_params(params)

    bs, max_crops = 2, 4
    pixel_values = jax.random.normal(ks[11], (bs, 1 + max_crops, CIN, CROP, CROP), jnp.float32)
    image_sizes = np.array([[2 * CROP, 2 * CROP], [1 * CROP, 2 * CROP]], dtype=np.int64)

    S = 64
    rng = np.random.RandomState(0)
    input_ids = rng.randint(0, 1000, size=(1, S)).astype(np.int32)
    # image 0: (2*2+1)*4 + 1 + 3*2 = 27 tokens ;  image 1: (1*2+1)*4 + 1 + 2*2 = 17 tokens
    input_ids[0, 4:31] = IMAGE_TOKEN_ID
    input_ids[0, 36:53] = IMAGE_TOKEN_ID

    out = forward(input_ids, pixel_values, image_sizes, params,
                  feat_fn=pallas_patch_embed, proj_fn=pallas_proj, wte_fn=pallas_wte)
    out = jax.block_until_ready(out)

    ref = forward(input_ids, pixel_values, image_sizes, params,
                  feat_fn=jnp_patch_embed, proj_fn=jnp_proj, wte_fn=jnp_wte)
    ref = jax.block_until_ready(ref)

    assert out.shape == (S, HIDDEN)
    # bf16 MXU operands + tanh-GELU vs the f32 / exact-erf reference: observed error is
    # O(1e-2) absolute at worst, well inside 2e-2.
    np.testing.assert_allclose(np.asarray(out), np.asarray(ref), rtol=2e-2, atol=2e-2)
    print("KERNEL_OK")
</pallas_src>

<mosaic_0001>
module attributes {stable_mosaic.version = 11 : i64} {
  func.func @_patch_embed_kernel(%arg0: i32, %arg1: memref<256x48xbf16, #tpu.memory_space<vmem>>, %arg2: memref<48x128xbf16, #tpu.memory_space<vmem>>, %arg3: memref<256x128xf32, #tpu.memory_space<vmem>>, %arg4: memref<1x128xf32, #tpu.memory_space<vmem>>, %arg5: memref<1x128xf32, #tpu.memory_space<vmem>>, %arg6: memref<256x128xf32, #tpu.memory_space<vmem>>) attributes {dimension_semantics = [#tpu.dimension_semantics<parallel>], iteration_bounds = array<i64: 1>, scalar_prefetch = 0 : i64, scratch_operands = 0 : i64, tpu.core_type = #tpu.core_type<tc>, window_params = [{transform_indices = @transform_0, window_bounds = array<i64: 256, 48>}, {pipeline_mode = #tpu.pipeline_mode<synchronous>, transform_indices = @transform_1, window_bounds = array<i64: 48, 128>}, {pipeline_mode = #tpu.pipeline_mode<synchronous>, transform_indices = @transform_2, window_bounds = array<i64: 256, 128>}, {pipeline_mode = #tpu.pipeline_mode<synchronous>, transform_indices = @transform_3, window_bounds = array<i64: 1, 128>}, {pipeline_mode = #tpu.pipeline_mode<synchronous>, transform_indices = @transform_4, window_bounds = array<i64: 1, 128>}, {transform_indices = @transform_5, window_bounds = array<i64: 256, 128>}]} {
    %c0 = arith.constant 0 : index
    %c0_0 = arith.constant 0 : index
    %0 = vector.load %arg1[%c0, %c0_0] : memref<256x48xbf16, #tpu.memory_space<vmem>>, vector<256x48xbf16>
    %c0_1 = arith.constant 0 : index
    %c0_2 = arith.constant 0 : index
    %1 = vector.load %arg2[%c0_1, %c0_2] : memref<48x128xbf16, #tpu.memory_space<vmem>>, vector<48x128xbf16>
    %cst = arith.constant dense<0.000000e+00> : vector<256x128xf32>
    %2 = tpu.matmul %0, %1, %cst {dimension_numbers = #tpu.dot_dimension_numbers<[1], [0], [0], [1], [0, 0, 1, 1], [], []>} : vector<256x48xbf16>, vector<48x128xbf16>, vector<256x128xf32> -> vector<256x128xf32>
    %c0_3 = arith.constant 0 : index
    %c0_4 = arith.constant 0 : index
    %3 = vector.load %arg3[%c0_3, %c0_4] : memref<256x128xf32, #tpu.memory_space<vmem>>, vector<256x128xf32>
    %4 = arith.addf %2, %3 : vector<256x128xf32>
    %cst_5 = arith.constant dense<0.000000e+00> : vector<256xf32>
    %5 = vector.multi_reduction <add>, %4, %cst_5 [1] : vector<256x128xf32> to vector<256xf32>
    %6 = vector.shape_cast %5 : vector<256xf32> to vector<256x1xf32>
    %cst_6 = arith.constant 1.280000e+02 : f32
    %7 = vector.broadcast %cst_6 : f32 to vector<256x1xf32>
    %8 = arith.divf %6, %7 : vector<256x1xf32>
    %9 = arith.mulf %4, %4 : vector<256x128xf32>
    %cst_7 = arith.constant dense<0.000000e+00> : vector<256xf32>
    %10 = vector.multi_reduction <add>, %9, %cst_7 [1] : vector<256x128xf32> to vector<256xf32>
    %11 = vector.shape_cast %10 : vector<256xf32> to vector<256x1xf32>
    %cst_8 = arith.constant 1.280000e+02 : f32
    %12 = vector.broadcast %cst_8 : f32 to vector<256x1xf32>
    %13 = arith.divf %11, %12 : vector<256x1xf32>
    %14 = arith.mulf %8, %8 : vector<256x1xf32>
    %15 = arith.subf %13, %14 : vector<256x1xf32>
    %16 = vector.broadcast %8 : vector<256x1xf32> to vector<256x128xf32>
    %17 = arith.subf %4, %16 : vector<256x128xf32>
    %cst_9 = arith.constant 9.99999974E-6 : f32
    %18 = vector.broadcast %cst_9 : f32 to vector<256x1xf32>
    %19 = arith.addf %15, %18 : vector<256x1xf32>
    %20 = math.rsqrt %19 : vector<256x1xf32>
    %21 = vector.broadcast %20 : vector<256x1xf32> to vector<256x128xf32>
    %22 = arith.mulf %17, %21 : vector<256x128xf32>
    %c0_10 = arith.constant 0 : index
    %c0_11 = arith.constant 0 : index
    %23 = vector.load %arg4[%c0_10, %c0_11] : memref<1x128xf32, #tpu.memory_space<vmem>>, vector<1x128xf32>
    %24 = vector.broadcast %23 : vector<1x128xf32> to vector<256x128xf32>
    %25 = arith.mulf %22, %24 : vector<256x128xf32>
    %c0_12 = arith.constant 0 : index
    %c0_13 = arith.constant 0 : index
    %26 = vector.load %arg5[%c0_12, %c0_13] : memref<1x128xf32, #tpu.memory_space<vmem>>, vector<1x128xf32>
    %27 = vector.broadcast %26 : vector<1x128xf32> to vector<256x128xf32>
    %28 = arith.addf %25, %27 : vector<256x128xf32>
    %c0_14 = arith.constant 0 : index
    %c0_15 = arith.constant 0 : index
    %29 = vector.load %arg6[%c0_14, %c0_15] : memref<256x128xf32, #tpu.memory_space<vmem>>, vector<256x128xf32>
    tpu.vector_store %arg6[%c0_14, %c0_15], %28 {strides = array<i32>} : memref<256x128xf32, #tpu.memory_space<vmem>>, vector<256x128xf32>,
    return
  }
  func.func @transform_0(%arg0: i32) -> (i32, i32) {
    %c0_i32 = arith.constant 0 : i32
    %c0_i32_0 = arith.constant 0 : i32
    return %arg0, %c0_i32 : i32, i32
  }
  func.func @transform_1(%arg0: i32) -> (i32, i32) {
    %c0_i32 = arith.constant 0 : i32
    %c0_i32_0 = arith.constant 0 : i32
    %c0_i32_1 = arith.constant 0 : i32
    return %c0_i32, %c0_i32_0 : i32, i32
  }
  func.func @transform_2(%arg0: i32) -> (i32, i32) {
    %c0_i32 = arith.constant 0 : i32
    %c0_i32_0 = arith.constant 0 : i32
    %c0_i32_1 = arith.constant 0 : i32
    return %c0_i32, %c0_i32_0 : i32, i32
  }
  func.func @transform_3(%arg0: i32) -> (i32, i32) {
    %c0_i32 = arith.constant 0 : i32
    %c0_i32_0 = arith.constant 0 : i32
    %c0_i32_1 = arith.constant 0 : i32
    return %c0_i32, %c0_i32_0 : i32, i32
  }
  func.func @transform_4(%arg0: i32) -> (i32, i32) {
    %c0_i32 = arith.constant 0 : i32
    %c0_i32_0 = arith.constant 0 : i32
    %c0_i32_1 = arith.constant 0 : i32
    return %c0_i32, %c0_i32_0 : i32, i32
  }
  func.func @transform_5(%arg0: i32) -> (i32, i32) {
    %c0_i32 = arith.constant 0 : i32
    %c0_i32_0 = arith.constant 0 : i32
    return %arg0, %c0_i32 : i32, i32
  }
}

</mosaic_0001>

<llo_original>
// kernel: tpu_custom_call.1
$region0: #{tpu_custom_call.1}
  #allocation0 [shape = 'u32[]', space=smem, size = 0x4, offset = 0x4, fixed_abs, tag = 'smem constant byte address 0x4 - core index']
  #allocation1 [shape = 'u32[144,128]{1,0:T(1,128)}', space=vmem, size = 0x12000, scoped, tag = 'internal scratch']
  %s0 = inlined_call_operand.vmem [shape: bf16[256,48], index: 0, kind: input, shape index: {}]
  %s1 = inlined_call_operand.vmem [shape: bf16[48,128], index: 1, kind: input, shape index: {}]
  %s2 = inlined_call_operand.hbm [shape: f32[256,128], index: 2, kind: input, shape index: {}]
  %s3 = inlined_call_operand.vmem [shape: f32[1,128], index: 3, kind: input, shape index: {}]
  %s4 = inlined_call_operand.vmem [shape: f32[1,128], index: 4, kind: input, shape index: {}]
  %s5 = inlined_call_operand.hbm [shape: f32[256,128], index: 5, kind: output, shape index: {}]
  %s6 = sld [smem:[#allocation0]]
  $region34: #{tpu_custom_call.1} parent=0
    _
  %s8 = ssub.s32 1, %s6
  %s9 = scalar_select 0, %s8, %s6
  $region1: #{tpu_custom_call.1} parent=0
    #allocation2 [shape = 'u8[131072]{0}', space=vmem, size = 0x20000, scoped, tag = 'input window, operand 2, single buffered']
    #allocation3 [shape = 's32[1]{0}', space=sflag, size = 0x4, scoped, tag = 'scoped memory for tpu_custom_call.1']
    #allocation4 [shape = 's32[1]{0}', space=sflag, size = 0x4, scoped, tag = 'scoped memory for tpu_custom_call.1']
    #allocation5 [shape = 'u8[131072]{0}', space=vmem, size = 0x20000, scoped, tag = 'output window, operand 0, single buffered']
    %10 = vsyncpa [#allocation3], 0
    %11 = vsyncpa [#allocation4], 0
    // Predicated region
    $region2: #{tpu_custom_call.1} parent=1 // pred_check
      _
    $region3: #{tpu_custom_call.1} parent=1 // pred_check_branch
      %13 = sbr.rel (0) target = $region5
    $region4: #{tpu_custom_call.1} parent=1 // pred_region
      _
    $region5: #{tpu_custom_call.1} parent=1 // pred_fallthru
      _
    // Predicated region
    $region6: #{tpu_custom_call.1} parent=1 // pred_check
      _
    $region7: #{tpu_custom_call.1} parent=1 // pred_check_branch
      %15 = sbr.rel (0) target = $region9
    $region8: #{tpu_custom_call.1} parent=1 // pred_region
      _
    $region9: #{tpu_custom_call.1} parent=1 // pred_fallthru
      _
    // Predicated region
    $region10: #{tpu_custom_call.1} parent=1 // pred_check
      _
    $region11: #{tpu_custom_call.1} parent=1 // pred_check_branch
      %17 = sbr.rel (0) target = $region13
    $region12: #{tpu_custom_call.1} parent=1 // pred_region
      %s19 = ssub.s32 4096, 4096
      %20 = vsyncadd [#allocation3], %s19
      %s21 = sshll.u32 [#allocation2], 4
      %s22 = int_to_ptr.vmem [resolvable:$true] %s21
      %27 = dma.hbm_to_vmem [thread:$0]  %s2, 4096, %s22, [#allocation3], 128, 128, 8
    $region13: #{tpu_custom_call.1} parent=1 // pred_fallthru
      _
    // Predicated region
    $region14: #{tpu_custom_call.1} parent=1 // pred_check
      _
    $region15: #{tpu_custom_call.1} parent=1 // pred_check_branch
      %29 = sbr.rel (0) target = $region17
    $region16: #{tpu_custom_call.1} parent=1 // pred_region
      _
    $region17: #{tpu_custom_call.1} parent=1 // pred_fallthru
      _
    // Predicated region
    $region18: #{tpu_custom_call.1} parent=1 // pred_check
      _
    $region19: #{tpu_custom_call.1} parent=1 // pred_check_branch
      %31 = sbr.rel (0) target = $region21
    $region20: #{tpu_custom_call.1} parent=1 // pred_region
      _
    $region21: #{tpu_custom_call.1} parent=1 // pred_fallthru
      _
    // Predicated region
    $region22: #{tpu_custom_call.1} parent=1 // pred_check
      _
    $region23: #{tpu_custom_call.1} parent=1 // pred_check_branch
      %33 = sbr.rel (0) target = $region25
    $region24: #{tpu_custom_call.1} parent=1 // pred_region
      %34 = dma.done [#allocation3], 4096
    $region25: #{tpu_custom_call.1} parent=1 // pred_fallthru
      _
    %v36 = vld [vmem:[%s0] sm:$0xf]
    %v37 = vld [vmem:[%s0 + $0x4] sm:$0xf]
    %v38 = vld [vmem:[%s0 + $0x8] sm:$0xf]
    %v39 = vld [vmem:[%s0 + $0xc] sm:$0xf]
    %v40 = vld [vmem:[%s0 + $0x10] sm:$0xf]
    %v41 = vld [vmem:[%s0 + $0x14] sm:$0xf]
    %v42 = vld [vmem:[%s0 + $0x18] sm:$0xf]
    %v43 = vld [vmem:[%s0 + $0x1c] sm:$0xf]
    %v44 = vld [vmem:[%s0 + $0x20] sm:$0xf]
    %v45 = vld [vmem:[%s0 + $0x24] sm:$0xf]
    %v46 = vld [vmem:[%s0 + $0x28] sm:$0xf]
    %v47 = vld [vmem:[%s0 + $0x2c] sm:$0xf]
    %v48 = vld [vmem:[%s0 + $0x30] sm:$0xf]
    %v49 = vld [vmem:[%s0 + $0x34] sm:$0xf]
    %v50 = vld [vmem:[%s0 + $0x38] sm:$0xf]
    %v51 = vld [vmem:[%s0 + $0x3c] sm:$0xf]
    %v52 = vld [vmem:[%s0 + $0x40] sm:$0xf]
    %v53 = vld [vmem:[%s0 + $0x44] sm:$0xf]
    %v54 = vld [vmem:[%s0 + $0x48] sm:$0xf]
    %v55 = vld [vmem:[%s0 + $0x4c] sm:$0xf]
    %v56 = vld [vmem:[%s0 + $0x50] sm:$0xf]
    %v57 = vld [vmem:[%s0 + $0x54] sm:$0xf]
    %v58 = vld [vmem:[%s0 + $0x58] sm:$0xf]
    %v59 = vld [vmem:[%s0 + $0x5c] sm:$0xf]
    %v60 = vld [vmem:[%s0 + $0x60] sm:$0xf]
    %v61 = vld [vmem:[%s0 + $0x64] sm:$0xf]
    %v62 = vld [vmem:[%s0 + $0x68] sm:$0xf]
    %v63 = vld [vmem:[%s0 + $0x6c] sm:$0xf]
    %v64 = vld [vmem:[%s0 + $0x70] sm:$0xf]
    %v65 = vld [vmem:[%s0 + $0x74] sm:$0xf]
    %v66 = vld [vmem:[%s0 + $0x78] sm:$0xf]
    %v67 = vld [vmem:[%s0 + $0x7c] sm:$0xf]
    %v68 = vld [vmem:[%s1] sm:$0xf]
    %v69 = vld [vmem:[%s1 + $0x4] sm:$0xf]
    %v70 = vld [vmem:[%s1 + $0x8] sm:$0xf]
    %v71 = vld [vmem:[%s1 + $0xc] sm:$0xf]
    %v72 = vld [vmem:[%s1 + $0x10] sm:$0xf]
    %v73 = vld [vmem:[%s1 + $0x14] sm:$0xf]
    %v74 = vld [vmem:[#allocation2] sm:$0xff]
    %v75 = vld [vmem:[#allocation2 + $0x8] sm:$0xff]
    %v76 = vld [vmem:[#allocation2 + $0x10] sm:$0xff]
    %v77 = vld [vmem:[#allocation2 + $0x18] sm:$0xff]
    %v78 = vld [vmem:[#allocation2 + $0x20] sm:$0xff]
    %v79 = vld [vmem:[#allocation2 + $0x28] sm:$0xff]
    %v80 = vld [vmem:[#allocation2 + $0x30] sm:$0xff]
    %v81 = vld [vmem:[#allocation2 + $0x38] sm:$0xff]
    %v82 = vld [vmem:[#allocation2 + $0x40] sm:$0xff]
    %v83 = vld [vmem:[#allocation2 + $0x48] sm:$0xff]
    %v84 = vld [vmem:[#allocation2 + $0x50] sm:$0xff]
    %v85 = vld [vmem:[#allocation2 + $0x58] sm:$0xff]
    %v86 = vld [vmem:[#allocation2 + $0x60] sm:$0xff]
    %v87 = vld [vmem:[#allocation2 + $0x68] sm:$0xff]
    %v88 = vld [vmem:[#allocation2 + $0x70] sm:$0xff]
    %v89 = vld [vmem:[#allocation2 + $0x78] sm:$0xff]
    %v90 = vld [vmem:[#allocation2 + $0x80] sm:$0xff]
    %v91 = vld [vmem:[#allocation2 + $0x88] sm:$0xff]
    %v92 = vld [vmem:[#allocation2 + $0x90] sm:$0xff]
    %v93 = vld [vmem:[#allocation2 + $0x98] sm:$0xff]
    %v94 = vld [vmem:[#allocation2 + $0xa0] sm:$0xff]
    %v95 = vld [vmem:[#allocation2 + $0xa8] sm:$0xff]
    %v96 = vld [vmem:[#allocation2 + $0xb0] sm:$0xff]
    %v97 = vld [vmem:[#allocation2 + $0xb8] sm:$0xff]
    %v98 = vld [vmem:[#allocation2 + $0xc0] sm:$0xff]
    %v99 = vld [vmem:[#allocation2 + $0xc8] sm:$0xff]
    %v100 = vld [vmem:[#allocation2 + $0xd0] sm:$0xff]
    %v101 = vld [vmem:[#allocation2 + $0xd8] sm:$0xff]
    %v102 = vld [vmem:[#allocation2 + $0xe0] sm:$0xff]
    %v103 = vld [vmem:[#allocation2 + $0xe8] sm:$0xff]
    %v104 = vld [vmem:[#allocation2 + $0xf0] sm:$0xff]
    %v105 = vld [vmem:[#allocation2 + $0xf8] sm:$0xff]
    %v138 = vunpack.c.l.b16 %v36
    %v139 = vunpack.c.l.b16 %v37
    %v140 = vunpack.c.l.b16 %v38
    %v141 = vunpack.c.l.b16 %v39
    %v142 = vunpack.c.l.b16 %v40
    %v143 = vunpack.c.l.b16 %v41
    %v144 = vunpack.c.l.b16 %v42
    %v145 = vunpack.c.l.b16 %v43
    %v146 = vunpack.c.l.b16 %v44
    %v147 = vunpack.c.l.b16 %v45
    %v148 = vunpack.c.l.b16 %v46
    %v149 = vunpack.c.l.b16 %v47
    %v150 = vunpack.c.l.b16 %v48
    %v151 = vunpack.c.l.b16 %v49
    %v152 = vunpack.c.l.b16 %v50
    %v153 = vunpack.c.l.b16 %v51
    %v154 = vunpack.c.l.b16 %v52
    %v155 = vunpack.c.l.b16 %v53
    %v156 = vunpack.c.l.b16 %v54
    %v157 = vunpack.c.l.b16 %v55
    %v158 = vunpack.c.l.b16 %v56
    %v159 = vunpack.c.l.b16 %v57
    %v160 = vunpack.c.l.b16 %v58
    %v161 = vunpack.c.l.b16 %v59
    %v162 = vunpack.c.l.b16 %v60
    %v163 = vunpack.c.l.b16 %v61
    %v164 = vunpack.c.l.b16 %v62
    %v165 = vunpack.c.l.b16 %v63
    %v166 = vunpack.c.l.b16 %v64
    %v167 = vunpack.c.l.b16 %v65
    %v168 = vunpack.c.l.b16 %v66
    %v169 = vunpack.c.l.b16 %v67
    %v170 = vpack.c.b16 %v139, %v138
    %v171 = vpack.c.b16 %v141, %v140
    %v172 = vpack.c.b16 %v143, %v142
    %v173 = vpack.c.b16 %v145, %v144
    %v174 = vpack.c.b16 %v147, %v146
    %v175 = vpack.c.b16 %v149, %v148
    %v176 = vpack.c.b16 %v151, %v150
    %v177 = vpack.c.b16 %v153, %v152
    %v178 = vpack.c.b16 %v155, %v154
    %v179 = vpack.c.b16 %v157, %v156
    %v180 = vpack.c.b16 %v159, %v158
    %v181 = vpack.c.b16 %v161, %v160
    %v182 = vpack.c.b16 %v163, %v162
    %v183 = vpack.c.b16 %v165, %v164
    %v184 = vpack.c.b16 %v167, %v166
    %v185 = vpack.c.b16 %v169, %v168
    %v192 = vunpack.c.l.b16 %v68
    %v193 = vunpack.c.l.b16 %v69
    %v194 = vunpack.c.l.b16 %v70
    %v195 = vunpack.c.l.b16 %v71
    %v196 = vunpack.c.l.b16 %v72
    %v197 = vunpack.c.l.b16 %v73
    %v198 = vpack.c.b16 %v193, %v192
    %v199 = vpack.c.b16 %v195, %v194
    %v200 = vpack.c.b16 %v197, %v196
    %vm204 = vcmask 392192
    %v206 = vsel %vm204, %v170, 0
    %v209 = vsel %vm204, %v171, 0
    %v212 = vsel %vm204, %v172, 0
    %v215 = vsel %vm204, %v173, 0
    %v218 = vsel %vm204, %v174, 0
    %v221 = vsel %vm204, %v175, 0
    %v224 = vsel %vm204, %v176, 0
    %v227 = vsel %vm204, %v177, 0
    %v230 = vsel %vm204, %v178, 0
    %v233 = vsel %vm204, %v179, 0
    %v236 = vsel %vm204, %v180, 0
    %v239 = vsel %vm204, %v181, 0
    %v242 = vsel %vm204, %v182, 0
    %v245 = vsel %vm204, %v183, 0
    %v248 = vsel %vm204, %v184, 0
    %v251 = vsel %vm204, %v185, 0
    %253 = vmatprep.subr.bf16.mxu0 0
    %254 = vmatpush1.bf16.msra.mxu0 %v198
    %255 = vmatprep.subr.bf16.mxu0 0
    %256 = vmatpush1.bf16.msra.mxu0 %v199
    %257 = vmatprep.subr.bf16.mxu0 0
    %258 = vmatpush1.bf16.msra.mxu0 %v200
    %259 = vmatprep.subr.bf16.mxu0 0
    %260 = vmatpush1.bf16.msra.mxu0 0
    %261 = vmatprep.subr.bf16.mxu0 0
    %262 = vmatpush1.bf16.msra.mxu0 0
    %263 = vmatprep.subr.bf16.mxu0 0
    %264 = vmatpush1.bf16.msra.mxu0 0
    %265 = vmatprep.subr.bf16.mxu0 0
    %266 = vmatpush1.bf16.msra.mxu0 0
    %267 = vmatprep.subr.bf16.mxu0 0
    %268 = vmatpush1.bf16.msra.mxu0 0
    %269 = vmatprep.subr.bf16.mxu0 0
    %270 = vmatpush1.bf16.msra.mxu0 0
    %271 = vmatprep.subr.bf16.mxu0 0
    %272 = vmatpush1.bf16.msra.mxu0 0
    %273 = vmatprep.subr.bf16.mxu0 0
    %274 = vmatpush1.bf16.msra.mxu0 0
    %275 = vmatprep.subr.bf16.mxu0 0
    %276 = vmatpush1.bf16.msra.mxu0 0
    %277 = vmatprep.subr.bf16.mxu0 0
    %278 = vmatpush1.bf16.msra.mxu0 0
    %279 = vmatprep.subr.bf16.mxu0 0
    %280 = vmatpush1.bf16.msra.mxu0 0
    %281 = vmatprep.subr.bf16.mxu0 0
    %282 = vmatpush1.bf16.msra.mxu0 0
    %283 = vmatprep.subr.bf16.mxu0 0
    %284 = vmatpush1.bf16.msra.mxu0 0
    %285 = vmatprep.mubr.bf16.mxu0 0
    %286 = vmatmul.mubr.bf16.gmra.mrb[0].mxu0 %v206
    %v287 = vpop.f32.mrb[0].mxu0
    %v288 = vadd.f32 %v74, %v287
    %v289 = vpop.f32.mrb[0].mxu0
    %v290 = vpop.f32.mrb[0].mxu0
    %v291 = vadd.f32 %v75, %v290
    %v292 = vpop.f32.mrb[0].mxu0
    %293 = vmatprep.mubr.bf16.mxu0 0
    %294 = vmatmul.mubr.bf16.gmra.mrb[0].mxu0 %v209
    %v295 = vpop.f32.mrb[0].mxu0
    %v296 = vadd.f32 %v76, %v295
    %v297 = vpop.f32.mrb[0].mxu0
    %v298 = vpop.f32.mrb[0].mxu0
    %v299 = vadd.f32 %v77, %v298
    %v300 = vpop.f32.mrb[0].mxu0
    %301 = vmatprep.mubr.bf16.mxu0 0
    %302 = vmatmul.mubr.bf16.gmra.mrb[0].mxu0 %v212
    %v303 = vpop.f32.mrb[0].mxu0
    %v304 = vadd.f32 %v78, %v303
    %v305 = vpop.f32.mrb[0].mxu0
    %v306 = vpop.f32.mrb[0].mxu0
    %v307 = vadd.f32 %v79, %v306
    %v308 = vpop.f32.mrb[0].mxu0
    %309 = vmatprep.mubr.bf16.mxu0 0
    %310 = vmatmul.mubr.bf16.gmra.mrb[0].mxu0 %v215
    %v311 = vpop.f32.mrb[0].mxu0
    %v312 = vadd.f32 %v80, %v311
    %v313 = vpop.f32.mrb[0].mxu0
    %v314 = vpop.f32.mrb[0].mxu0
    %v315 = vadd.f32 %v81, %v314
    %v316 = vpop.f32.mrb[0].mxu0
    %317 = vmatprep.mubr.bf16.mxu0 0
    %318 = vmatmul.mubr.bf16.gmra.mrb[0].mxu0 %v218
    %v319 = vpop.f32.mrb[0].mxu0
    %v320 = vadd.f32 %v82, %v319
    %v321 = vpop.f32.mrb[0].mxu0
    %v322 = vpop.f32.mrb[0].mxu0
    %v323 = vadd.f32 %v83, %v322
    %v324 = vpop.f32.mrb[0].mxu0
    %325 = vmatprep.mubr.bf16.mxu0 0
    %326 = vmatmul.mubr.bf16.gmra.mrb[0].mxu0 %v221
    %v327 = vpop.f32.mrb[0].mxu0
    %v328 = vadd.f32 %v84, %v327
    %v329 = vpop.f32.mrb[0].mxu0
    %v330 = vpop.f32.mrb[0].mxu0
    %v331 = vadd.f32 %v85, %v330
    %v332 = vpop.f32.mrb[0].mxu0
    %333 = vmatprep.mubr.bf16.mxu0 0
    %334 = vmatmul.mubr.bf16.gmra.mrb[0].mxu0 %v224
    %v335 = vpop.f32.mrb[0].mxu0
    %v336 = vadd.f32 %v86, %v335
    %v337 = vpop.f32.mrb[0].mxu0
    %v338 = vpop.f32.mrb[0].mxu0
    %v339 = vadd.f32 %v87, %v338
    %v340 = vpop.f32.mrb[0].mxu0
    %341 = vmatprep.mubr.bf16.mxu0 0
    %342 = vmatmul.mubr.bf16.gmra.mrb[0].mxu0 %v227
    %v343 = vpop.f32.mrb[0].mxu0
    %v344 = vadd.f32 %v88, %v343
    %v345 = vpop.f32.mrb[0].mxu0
    %v346 = vpop.f32.mrb[0].mxu0
    %v347 = vadd.f32 %v89, %v346
    %v348 = vpop.f32.mrb[0].mxu0
    %349 = vmatprep.mubr.bf16.mxu0 0
    %350 = vmatmul.mubr.bf16.gmra.mrb[0].mxu0 %v230
    %v351 = vpop.f32.mrb[0].mxu0
    %v352 = vadd.f32 %v90, %v351
    %v353 = vpop.f32.mrb[0].mxu0
    %v354 = vpop.f32.mrb[0].mxu0
    %v355 = vadd.f32 %v91, %v354
    %v356 = vpop.f32.mrb[0].mxu0
    %357 = vmatprep.mubr.bf16.mxu0 0
    %358 = vmatmul.mubr.bf16.gmra.mrb[0].mxu0 %v233
    %v359 = vpop.f32.mrb[0].mxu0
    %v360 = vadd.f32 %v92, %v359
    %v361 = vpop.f32.mrb[0].mxu0
    %v362 = vpop.f32.mrb[0].mxu0
    %v363 = vadd.f32 %v93, %v362
    %v364 = vpop.f32.mrb[0].mxu0
    %365 = vmatprep.mubr.bf16.mxu0 0
    %366 = vmatmul.mubr.bf16.gmra.mrb[0].mxu0 %v236
    %v367 = vpop.f32.mrb[0].mxu0
    %v368 = vadd.f32 %v94, %v367
    %v369 = vpop.f32.mrb[0].mxu0
    %v370 = vpop.f32.mrb[0].mxu0
    %v371 = vadd.f32 %v95, %v370
    %v372 = vpop.f32.mrb[0].mxu0
    %373 = vmatprep.mubr.bf16.mxu0 0
    %374 = vmatmul.mubr.bf16.gmra.mrb[0].mxu0 %v239
    %v375 = vpop.f32.mrb[0].mxu0
    %v376 = vadd.f32 %v96, %v375
    %v377 = vpop.f32.mrb[0].mxu0
    %v378 = vpop.f32.mrb[0].mxu0
    %v379 = vadd.f32 %v97, %v378
    %v380 = vpop.f32.mrb[0].mxu0
    %381 = vmatprep.mubr.bf16.mxu0 0
    %382 = vmatmul.mubr.bf16.gmra.mrb[0].mxu0 %v242
    %v383 = vpop.f32.mrb[0].mxu0
    %v384 = vadd.f32 %v98, %v383
    %v385 = vpop.f32.mrb[0].mxu0
    %v386 = vpop.f32.mrb[0].mxu0
    %v387 = vadd.f32 %v99, %v386
    %v388 = vpop.f32.mrb[0].mxu0
    %389 = vmatprep.mubr.bf16.mxu0 0
    %390 = vmatmul.mubr.bf16.gmra.mrb[0].mxu0 %v245
    %v391 = vpop.f32.mrb[0].mxu0
    %v392 = vadd.f32 %v100, %v391
    %v393 = vpop.f32.mrb[0].mxu0
    %v394 = vpop.f32.mrb[0].mxu0
    %v395 = vadd.f32 %v101, %v394
    %v396 = vpop.f32.mrb[0].mxu0
    %397 = vmatprep.mubr.bf16.mxu0 0
    %398 = vmatmul.mubr.bf16.gmra.mrb[0].mxu0 %v248
    %v399 = vpop.f32.mrb[0].mxu0
    %v400 = vadd.f32 %v102, %v399
    %v401 = vpop.f32.mrb[0].mxu0
    %v402 = vpop.f32.mrb[0].mxu0
    %v403 = vadd.f32 %v103, %v402
    %v404 = vpop.f32.mrb[0].mxu0
    %405 = vmatprep.mubr.bf16.mxu0 0
    %406 = vmatmul.mubr.bf16.gmra.mrb[0].mxu0 %v251
    %v407 = vpop.f32.mrb[0].mxu0
    %v408 = vadd.f32 %v104, %v407
    %v409 = vpop.f32.mrb[0].mxu0
    %v410 = vpop.f32.mrb[0].mxu0
    %v411 = vadd.f32 %v105, %v410
    %v412 = vpop.f32.mrb[0].mxu0
    %413 = vdwg.mxu0
    %414 = vadd.xlane.f32.xlu0 %v288
    %v415 = vpop.xlane.xlu0 %414
    %416 = vadd.xlane.f32.xlu0 %v291
    %v417 = vpop.xlane.xlu0 %416
    %418 = vadd.xlane.f32.xlu0 %v296
    %v419 = vpop.xlane.xlu0 %418
    %420 = vadd.xlane.f32.xlu0 %v299
    %v421 = vpop.xlane.xlu0 %420
    %422 = vadd.xlane.f32.xlu0 %v304
    %v423 = vpop.xlane.xlu0 %422
    %424 = vadd.xlane.f32.xlu0 %v307
    %v425 = vpop.xlane.xlu0 %424
    %426 = vadd.xlane.f32.xlu0 %v312
    %v427 = vpop.xlane.xlu0 %426
    %428 = vadd.xlane.f32.xlu0 %v315
    %v429 = vpop.xlane.xlu0 %428
    %430 = vadd.xlane.f32.xlu0 %v320
    %v431 = vpop.xlane.xlu0 %430
    %432 = vadd.xlane.f32.xlu0 %v323
    %v433 = vpop.xlane.xlu0 %432
    %434 = vadd.xlane.f32.xlu0 %v328
    %v435 = vpop.xlane.xlu0 %434
    %436 = vadd.xlane.f32.xlu0 %v331
    %v437 = vpop.xlane.xlu0 %436
    %438 = vadd.xlane.f32.xlu0 %v336
    %v439 = vpop.xlane.xlu0 %438
    %440 = vadd.xlane.f32.xlu0 %v339
    %v441 = vpop.xlane.xlu0 %440
    %442 = vadd.xlane.f32.xlu0 %v344
    %v443 = vpop.xlane.xlu0 %442
    %444 = vadd.xlane.f32.xlu0 %v347
    %v445 = vpop.xlane.xlu0 %444
    %446 = vadd.xlane.f32.xlu0 %v352
    %v447 = vpop.xlane.xlu0 %446
    %448 = vadd.xlane.f32.xlu0 %v355
    %v449 = vpop.xlane.xlu0 %448
    %450 = vadd.xlane.f32.xlu0 %v360
    %v451 = vpop.xlane.xlu0 %450
    %452 = vadd.xlane.f32.xlu0 %v363
    %v453 = vpop.xlane.xlu0 %452
    %454 = vadd.xlane.f32.xlu0 %v368
    %v455 = vpop.xlane.xlu0 %454
    %456 = vadd.xlane.f32.xlu0 %v371
    %v457 = vpop.xlane.xlu0 %456
    %458 = vadd.xlane.f32.xlu0 %v376
    %v459 = vpop.xlane.xlu0 %458
    %460 = vadd.xlane.f32.xlu0 %v379
    %v461 = vpop.xlane.xlu0 %460
    %462 = vadd.xlane.f32.xlu0 %v384
    %v463 = vpop.xlane.xlu0 %462
    %464 = vadd.xlane.f32.xlu0 %v387
    %v465 = vpop.xlane.xlu0 %464
    %466 = vadd.xlane.f32.xlu0 %v392
    %v467 = vpop.xlane.xlu0 %466
    %468 = vadd.xlane.f32.xlu0 %v395
    %v469 = vpop.xlane.xlu0 %468
    %470 = vadd.xlane.f32.xlu0 %v400
    %v471 = vpop.xlane.xlu0 %470
    %472 = vadd.xlane.f32.xlu0 %v403
    %v473 = vpop.xlane.xlu0 %472
    %474 = vadd.xlane.f32.xlu0 %v408
    %v475 = vpop.xlane.xlu0 %474
    %476 = vadd.xlane.f32.xlu0 %v411
    %v477 = vpop.xlane.xlu0 %476
    %v478 = vrcp.pop 128.0
    %v479 = vmul.f32 %v415, %v478
    %v480 = vmul.f32 %v417, %v478
    %v481 = vmul.f32 %v419, %v478
    %v482 = vmul.f32 %v421, %v478
    %v483 = vmul.f32 %v423, %v478
    %v484 = vmul.f32 %v425, %v478
    %v485 = vmul.f32 %v427, %v478
    %v486 = vmul.f32 %v429, %v478
    %v487 = vmul.f32 %v431, %v478
    %v488 = vmul.f32 %v433, %v478
    %v489 = vmul.f32 %v435, %v478
    %v490 = vmul.f32 %v437, %v478
    %v491 = vmul.f32 %v439, %v478
    %v492 = vmul.f32 %v441, %v478
    %v493 = vmul.f32 %v443, %v478
    %v494 = vmul.f32 %v445, %v478
    %v495 = vmul.f32 %v447, %v478
    %v496 = vmul.f32 %v449, %v478
    %v497 = vmul.f32 %v451, %v478
    %v498 = vmul.f32 %v453, %v478
    %v499 = vmul.f32 %v455, %v478
    %v500 = vmul.f32 %v457, %v478
    %v501 = vmul.f32 %v459, %v478
    %v502 = vmul.f32 %v461, %v478
    %v503 = vmul.f32 %v463, %v478
    %v504 = vmul.f32 %v465, %v478
    %v505 = vmul.f32 %v467, %v478
    %v506 = vmul.f32 %v469, %v478
    %v507 = vmul.f32 %v471, %v478
    %v508 = vmul.f32 %v473, %v478
    %v509 = vmul.f32 %v475, %v478
    %v510 = vmul.f32 %v477, %v478
    %v511 = vmul.f32 %v288, %v288
    %v512 = vmul.f32 %v291, %v291
    %v513 = vmul.f32 %v296, %v296
    %v514 = vmul.f32 %v299, %v299
    %v515 = vmul.f32 %v304, %v304
    %v516 = vmul.f32 %v307, %v307
    %v517 = vmul.f32 %v312, %v312
    %v518 = vmul.f32 %v315, %v315
    %v519 = vmul.f32 %v320, %v320
    %v520 = vmul.f32 %v323, %v323
    %v521 = vmul.f32 %v328, %v328
    %v522 = vmul.f32 %v331, %v331
    %v523 = vmul.f32 %v336, %v336
    %v524 = vmul.f32 %v339, %v339
    %v525 = vmul.f32 %v344, %v344
    %v526 = vmul.f32 %v347, %v347
    %v527 = vmul.f32 %v352, %v352
    %v528 = vmul.f32 %v355, %v355
    %v529 = vmul.f32 %v360, %v360
    %v530 = vmul.f32 %v363, %v363
    %v531 = vmul.f32 %v368, %v368
    %v532 = vmul.f32 %v371, %v371
    %v533 = vmul.f32 %v376, %v376
    %v534 = vmul.f32 %v379, %v379
    %v535 = vmul.f32 %v384, %v384
    %v536 = vmul.f32 %v387, %v387
    %v537 = vmul.f32 %v392, %v392
    %v538 = vmul.f32 %v395, %v395
    %v539 = vmul.f32 %v400, %v400
    %v540 = vmul.f32 %v403, %v403
    %v541 = vmul.f32 %v408, %v408
    %v542 = vmul.f32 %v411, %v411
    %543 = vadd.xlane.f32.xlu0 %v511
    %v544 = vpop.xlane.xlu0 %543
    %545 = vadd.xlane.f32.xlu0 %v512
    %v546 = vpop.xlane.xlu0 %545
    %547 = vadd.xlane.f32.xlu0 %v513
    %v548 = vpop.xlane.xlu0 %547
    %549 = vadd.xlane.f32.xlu0 %v514
    %v550 = vpop.xlane.xlu0 %549
    %551 = vadd.xlane.f32.xlu0 %v515
    %v552 = vpop.xlane.xlu0 %551
    %553 = vadd.xlane.f32.xlu0 %v516
    %v554 = vpop.xlane.xlu0 %553
    %555 = vadd.xlane.f32.xlu0 %v517
    %v556 = vpop.xlane.xlu0 %555
    %557 = vadd.xlane.f32.xlu0 %v518
    %v558 = vpop.xlane.xlu0 %557
    %559 = vadd.xlane.f32.xlu0 %v519
    %v560 = vpop.xlane.xlu0 %559
    %561 = vadd.xlane.f32.xlu0 %v520
    %v562 = vpop.xlane.xlu0 %561
    %563 = vadd.xlane.f32.xlu0 %v521
    %v564 = vpop.xlane.xlu0 %563
    %565 = vadd.xlane.f32.xlu0 %v522
    %v566 = vpop.xlane.xlu0 %565
    %567 = vadd.xlane.f32.xlu0 %v523
    %v568 = vpop.xlane.xlu0 %567
    %569 = vadd.xlane.f32.xlu0 %v524
    %v570 = vpop.xlane.xlu0 %569
    %571 = vadd.xlane.f32.xlu0 %v525
    %v572 = vpop.xlane.xlu0 %571
    %573 = vadd.xlane.f32.xlu0 %v526
    %v574 = vpop.xlane.xlu0 %573
    %575 = vadd.xlane.f32.xlu0 %v527
    %v576 = vpop.xlane.xlu0 %575
    %577 = vadd.xlane.f32.xlu0 %v528
    %v578 = vpop.xlane.xlu0 %577
    %579 = vadd.xlane.f32.xlu0 %v529
    %v580 = vpop.xlane.xlu0 %579
    %581 = vadd.xlane.f32.xlu0 %v530
    %v582 = vpop.xlane.xlu0 %581
    %583 = vadd.xlane.f32.xlu0 %v531
    %v584 = vpop.xlane.xlu0 %583
    %585 = vadd.xlane.f32.xlu0 %v532
    %v586 = vpop.xlane.xlu0 %585
    %587 = vadd.xlane.f32.xlu0 %v533
    %v588 = vpop.xlane.xlu0 %587
    %589 = vadd.xlane.f32.xlu0 %v534
    %v590 = vpop.xlane.xlu0 %589
    %591 = vadd.xlane.f32.xlu0 %v535
    %v592 = vpop.xlane.xlu0 %591
    %593 = vadd.xlane.f32.xlu0 %v536
    %v594 = vpop.xlane.xlu0 %593
    %595 = vadd.xlane.f32.xlu0 %v537
    %v596 = vpop.xlane.xlu0 %595
    %597 = vadd.xlane.f32.xlu0 %v538
    %v598 = vpop.xlane.xlu0 %597
    %599 = vadd.xlane.f32.xlu0 %v539
    %v600 = vpop.xlane.xlu0 %599
    %601 = vadd.xlane.f32.xlu0 %v540
    %v602 = vpop.xlane.xlu0 %601
    %603 = vadd.xlane.f32.xlu0 %v541
    %v604 = vpop.xlane.xlu0 %603
    %605 = vadd.xlane.f32.xlu0 %v542
    %v606 = vpop.xlane.xlu0 %605
    %v607 = vmul.f32 %v544, %v478
    %v608 = vmul.f32 %v546, %v478
    %v609 = vmul.f32 %v548, %v478
    %v610 = vmul.f32 %v550, %v478
    %v611 = vmul.f32 %v552, %v478
    %v612 = vmul.f32 %v554, %v478
    %v613 = vmul.f32 %v556, %v478
    %v614 = vmul.f32 %v558, %v478
    %v615 = vmul.f32 %v560, %v478
    %v616 = vmul.f32 %v562, %v478
    %v617 = vmul.f32 %v564, %v478
    %v618 = vmul.f32 %v566, %v478
    %v619 = vmul.f32 %v568, %v478
    %v620 = vmul.f32 %v570, %v478
    %v621 = vmul.f32 %v572, %v478
    %v622 = vmul.f32 %v574, %v478
    %v623 = vmul.f32 %v576, %v478
    %v624 = vmul.f32 %v578, %v478
    %v625 = vmul.f32 %v580, %v478
    %v626 = vmul.f32 %v582, %v478
    %v627 = vmul.f32 %v584, %v478
    %v628 = vmul.f32 %v586, %v478
    %v629 = vmul.f32 %v588, %v478
    %v630 = vmul.f32 %v590, %v478
    %v631 = vmul.f32 %v592, %v478
    %v632 = vmul.f32 %v594, %v478
    %v633 = vmul.f32 %v596, %v478
    %v634 = vmul.f32 %v598, %v478
    %v635 = vmul.f32 %v600, %v478
    %v636 = vmul.f32 %v602, %v478
    %v637 = vmul.f32 %v604, %v478
    %v638 = vmul.f32 %v606, %v478
    %v639 = vmul.f32 %v479, %v479
    %v640 = vmul.f32 %v480, %v480
    %v641 = vmul.f32 %v481, %v481
    %v642 = vmul.f32 %v482, %v482
    %v643 = vmul.f32 %v483, %v483
    %v644 = vmul.f32 %v484, %v484
    %v645 = vmul.f32 %v485, %v485
    %v646 = vmul.f32 %v486, %v486
    %v647 = vmul.f32 %v487, %v487
    %v648 = vmul.f32 %v488, %v488
    %v649 = vmul.f32 %v489, %v489
    %v650 = vmul.f32 %v490, %v490
    %v651 = vmul.f32 %v491, %v491
    %v652 = vmul.f32 %v492, %v492
    %v653 = vmul.f32 %v493, %v493
    %v654 = vmul.f32 %v494, %v494
    %v655 = vmul.f32 %v495, %v495
    %v656 = vmul.f32 %v496, %v496
    %v657 = vmul.f32 %v497, %v497
    %v658 = vmul.f32 %v498, %v498
    %v659 = vmul.f32 %v499, %v499
    %v660 = vmul.f32 %v500, %v500
    %v661 = vmul.f32 %v501, %v501
    %v662 = vmul.f32 %v502, %v502
    %v663 = vmul.f32 %v503, %v503
    %v664 = vmul.f32 %v504, %v504
    %v665 = vmul.f32 %v505, %v505
    %v666 = vmul.f32 %v506, %v506
    %v667 = vmul.f32 %v507, %v507
    %v668 = vmul.f32 %v508, %v508
    %v669 = vmul.f32 %v509, %v509
    %v670 = vmul.f32 %v510, %v510
    %v671 = vsub.f32 %v607, %v639
    %v672 = vsub.f32 %v608, %v640
    %v673 = vsub.f32 %v609, %v641
    %v674 = vsub.f32 %v610, %v642
    %v675 = vsub.f32 %v611, %v643
    %v676 = vsub.f32 %v612, %v644
    %v677 = vsub.f32 %v613, %v645
    %v678 = vsub.f32 %v614, %v646
    %v679 = vsub.f32 %v615, %v647
    %v680 = vsub.f32 %v616, %v648
    %v681 = vsub.f32 %v617, %v649
    %v682 = vsub.f32 %v618, %v650
    %v683 = vsub.f32 %v619, %v651
    %v684 = vsub.f32 %v620, %v652
    %v685 = vsub.f32 %v621, %v653
    %v686 = vsub.f32 %v622, %v654
    %v687 = vsub.f32 %v623, %v655
    %v688 = vsub.f32 %v624, %v656
    %v689 = vsub.f32 %v625, %v657
    %v690 = vsub.f32 %v626, %v658
    %v691 = vsub.f32 %v627, %v659
    %v692 = vsub.f32 %v628, %v660
    %v693 = vsub.f32 %v629, %v661
    %v694 = vsub.f32 %v630, %v662
    %v695 = vsub.f32 %v631, %v663
    %v696 = vsub.f32 %v632, %v664
    %v697 = vsub.f32 %v633, %v665
    %v698 = vsub.f32 %v634, %v666
    %v699 = vsub.f32 %v635, %v667
    %v700 = vsub.f32 %v636, %v668
    %v701 = vsub.f32 %v637, %v669
    %v702 = vsub.f32 %v638, %v670
    %v703 = vsub.f32 %v288, %v479
    %v704 = vsub.f32 %v291, %v480
    %v705 = vsub.f32 %v296, %v481
    %v706 = vsub.f32 %v299, %v482
    %v707 = vsub.f32 %v304, %v483
    %v708 = vsub.f32 %v307, %v484
    %v709 = vsub.f32 %v312, %v485
    %v710 = vsub.f32 %v315, %v486
    %v711 = vsub.f32 %v320, %v487
    %v712 = vsub.f32 %v323, %v488
    %v713 = vsub.f32 %v328, %v489
    %v714 = vsub.f32 %v331, %v490
    %v715 = vsub.f32 %v336, %v491
    %v716 = vsub.f32 %v339, %v492
    %v717 = vsub.f32 %v344, %v493
    %v718 = vsub.f32 %v347, %v494
    %v719 = vsub.f32 %v352, %v495
    %v720 = vsub.f32 %v355, %v496
    %v721 = vsub.f32 %v360, %v497
    %v722 = vsub.f32 %v363, %v498
    %v723 = vsub.f32 %v368, %v499
    %v724 = vsub.f32 %v371, %v500
    %v725 = vsub.f32 %v376, %v501
    %v726 = vsub.f32 %v379, %v502
    %v727 = vsub.f32 %v384, %v503
    %v728 = vsub.f32 %v387, %v504
    %v729 = vsub.f32 %v392, %v505
    %v730 = vsub.f32 %v395, %v506
    %v731 = vsub.f32 %v400, %v507
    %v732 = vsub.f32 %v403, %v508
    %v733 = vsub.f32 %v408, %v509
    %v734 = vsub.f32 %v411, %v510
    %v735 = vadd.f32 %v671, 1e-05
    %v736 = vadd.f32 %v672, 1e-05
    %v737 = vadd.f32 %v673, 1e-05
    %v738 = vadd.f32 %v674, 1e-05
    %v739 = vadd.f32 %v675, 1e-05
    %v740 = vadd.f32 %v676, 1e-05
    %v741 = vadd.f32 %v677, 1e-05
    %v742 = vadd.f32 %v678, 1e-05
    %v743 = vadd.f32 %v679, 1e-05
    %v744 = vadd.f32 %v680, 1e-05
    %v745 = vadd.f32 %v681, 1e-05
    %v746 = vadd.f32 %v682, 1e-05
    %v747 = vadd.f32 %v683, 1e-05
    %v748 = vadd.f32 %v684, 1e-05
    %v749 = vadd.f32 %v685, 1e-05
    %v750 = vadd.f32 %v686, 1e-05
    %v751 = vadd.f32 %v687, 1e-05
    %v752 = vadd.f32 %v688, 1e-05
    %v753 = vadd.f32 %v689, 1e-05
    %v754 = vadd.f32 %v690, 1e-05
    %v755 = vadd.f32 %v691, 1e-05
    %v756 = vadd.f32 %v692, 1e-05
    %v757 = vadd.f32 %v693, 1e-05
    %v758 = vadd.f32 %v694, 1e-05
    %v759 = vadd.f32 %v695, 1e-05
    %v760 = vadd.f32 %v696, 1e-05
    %v761 = vadd.f32 %v697, 1e-05
    %v762 = vadd.f32 %v698, 1e-05
    %v763 = vadd.f32 %v699, 1e-05
    %v764 = vadd.f32 %v700, 1e-05
    %v765 = vadd.f32 %v701, 1e-05
    %v766 = vadd.f32 %v702, 1e-05
    %v767 = vrsqrt.pop %v735
    %v768 = vrsqrt.pop %v736
    %v769 = vrsqrt.pop %v737
    %v770 = vrsqrt.pop %v738
    %v771 = vrsqrt.pop %v739
    %v772 = vrsqrt.pop %v740
    %v773 = vrsqrt.pop %v741
    %v774 = vrsqrt.pop %v742
    %v775 = vrsqrt.pop %v743
    %v776 = vrsqrt.pop %v744
    %v777 = vrsqrt.pop %v745
    %v778 = vrsqrt.pop %v746
    %v779 = vrsqrt.pop %v747
    %v780 = vrsqrt.pop %v748
    %v781 = vrsqrt.pop %v749
    %v782 = vrsqrt.pop %v750
    %v783 = vrsqrt.pop %v751
    %v784 = vrsqrt.pop %v752
    %v785 = vrsqrt.pop %v753
    %v786 = vrsqrt.pop %v754
    %v787 = vrsqrt.pop %v755
    %v788 = vrsqrt.pop %v756
    %v789 = vrsqrt.pop %v757
    %v790 = vrsqrt.pop %v758
    %v791 = vrsqrt.pop %v759
    %v792 = vrsqrt.pop %v760
    %v793 = vrsqrt.pop %v761
    %v794 = vrsqrt.pop %v762
    %v795 = vrsqrt.pop %v763
    %v796 = vrsqrt.pop %v764
    %v797 = vrsqrt.pop %v765
    %v798 = vrsqrt.pop %v766
    %v799 = vmul.f32 %v703, %v767
    %v800 = vmul.f32 %v704, %v768
    %v801 = vmul.f32 %v705, %v769
    %v802 = vmul.f32 %v706, %v770
    %v803 = vmul.f32 %v707, %v771
    %v804 = vmul.f32 %v708, %v772
    %v805 = vmul.f32 %v709, %v773
    %v806 = vmul.f32 %v710, %v774
    %v807 = vmul.f32 %v711, %v775
    %v808 = vmul.f32 %v712, %v776
    %v809 = vmul.f32 %v713, %v777
    %v810 = vmul.f32 %v714, %v778
    %v811 = vmul.f32 %v715, %v779
    %v812 = vmul.f32 %v716, %v780
    %v813 = vmul.f32 %v717, %v781
    %v814 = vmul.f32 %v718, %v782
    %v815 = vmul.f32 %v719, %v783
    %v816 = vmul.f32 %v720, %v784
    %v817 = vmul.f32 %v721, %v785
    %v818 = vmul.f32 %v722, %v786
    %v819 = vmul.f32 %v723, %v787
    %v820 = vmul.f32 %v724, %v788
    %v821 = vmul.f32 %v725, %v789
    %v822 = vmul.f32 %v726, %v790
    %v823 = vmul.f32 %v727, %v791
    %v824 = vmul.f32 %v728, %v792
    %v825 = vmul.f32 %v729, %v793
    %v826 = vmul.f32 %v730, %v794
    %v827 = vmul.f32 %v731, %v795
    %v828 = vmul.f32 %v732, %v796
    %v829 = vmul.f32 %v733, %v797
    %v830 = vmul.f32 %v734, %v798
    %v831 = vld [vmem:[%s3] sm:$0x1]
    %v833 = vlaneseq
    %v834 = vshrl.u32 %v833, 7
    %v835 = vsub.s32 0, %v834
    %v836 = vrot.slane %v831, %v835
    %v838 = vmul.f32 %v799, %v836
    %v839 = vmul.f32 %v800, %v836
    %v840 = vmul.f32 %v801, %v836
    %v841 = vmul.f32 %v802, %v836
    %v842 = vmul.f32 %v803, %v836
    %v843 = vmul.f32 %v804, %v836
    %v844 = vmul.f32 %v805, %v836
    %v845 = vmul.f32 %v806, %v836
    %v846 = vmul.f32 %v807, %v836
    %v847 = vmul.f32 %v808, %v836
    %v848 = vmul.f32 %v809, %v836
    %v849 = vmul.f32 %v810, %v836
    %v850 = vmul.f32 %v811, %v836
    %v851 = vmul.f32 %v812, %v836
    %v852 = vmul.f32 %v813, %v836
    %v853 = vmul.f32 %v814, %v836
    %v854 = vmul.f32 %v815, %v836
    %v855 = vmul.f32 %v816, %v836
    %v856 = vmul.f32 %v817, %v836
    %v857 = vmul.f32 %v818, %v836
    %v858 = vmul.f32 %v819, %v836
    %v859 = vmul.f32 %v820, %v836
    %v860 = vmul.f32 %v821, %v836
    %v861 = vmul.f32 %v822, %v836
    %v862 = vmul.f32 %v823, %v836
    %v863 = vmul.f32 %v824, %v836
    %v864 = vmul.f32 %v825, %v836
    %v865 = vmul.f32 %v826, %v836
    %v866 = vmul.f32 %v827, %v836
    %v867 = vmul.f32 %v828, %v836
    %v868 = vmul.f32 %v829, %v836
    %v869 = vmul.f32 %v830, %v836
    %v870 = vld [vmem:[%s4] sm:$0x1]
    %v872 = vlaneseq
    %v873 = vshrl.u32 %v872, 7
    %v874 = vsub.s32 0, %v873
    %v875 = vrot.slane %v870, %v874
    %v877 = vadd.f32 %v838, %v875
    %v878 = vadd.f32 %v839, %v875
    %v879 = vadd.f32 %v840, %v875
    %v880 = vadd.f32 %v841, %v875
    %v881 = vadd.f32 %v842, %v875
    %v882 = vadd.f32 %v843, %v875
    %v883 = vadd.f32 %v844, %v875
    %v884 = vadd.f32 %v845, %v875
    %v885 = vadd.f32 %v846, %v875
    %v886 = vadd.f32 %v847, %v875
    %v887 = vadd.f32 %v848, %v875
    %v888 = vadd.f32 %v849, %v875
    %v889 = vadd.f32 %v850, %v875
    %v890 = vadd.f32 %v851, %v875
    %v891 = vadd.f32 %v852, %v875
    %v892 = vadd.f32 %v853, %v875
    %v893 = vadd.f32 %v854, %v875
    %v894 = vadd.f32 %v855, %v875
    %v895 = vadd.f32 %v856, %v875
    %v896 = vadd.f32 %v857, %v875
    %v897 = vadd.f32 %v858, %v875
    %v898 = vadd.f32 %v859, %v875
    %v899 = vadd.f32 %v860, %v875
    %v900 = vadd.f32 %v861, %v875
    %v901 = vadd.f32 %v862, %v875
    %v902 = vadd.f32 %v863, %v875
    %v903 = vadd.f32 %v864, %v875
    %v904 = vadd.f32 %v865, %v875
    %v905 = vadd.f32 %v866, %v875
    %v906 = vadd.f32 %v867, %v875
    %v907 = vadd.f32 %v868, %v875
    %v908 = vadd.f32 %v869, %v875
    %909 = vst [vmem:[#allocation5] sm:$0xff] %v877
    %910 = vst [vmem:[#allocation5 + $0x8] sm:$0xff] %v878
    %911 = vst [vmem:[#allocation5 + $0x10] sm:$0xff] %v879
    %912 = vst [vmem:[#allocation5 + $0x18] sm:$0xff] %v880
    %913 = vst [vmem:[#allocation5 + $0x20] sm:$0xff] %v881
    %914 = vst [vmem:[#allocation5 + $0x28] sm:$0xff] %v882
    %915 = vst [vmem:[#allocation5 + $0x30] sm:$0xff] %v883
    %916 = vst [vmem:[#allocation5 + $0x38] sm:$0xff] %v884
    %917 = vst [vmem:[#allocation5 + $0x40] sm:$0xff] %v885
    %918 = vst [vmem:[#allocation5 + $0x48] sm:$0xff] %v886
    %919 = vst [vmem:[#allocation5 + $0x50] sm:$0xff] %v887
    %920 = vst [vmem:[#allocation5 + $0x58] sm:$0xff] %v888
    %921 = vst [vmem:[#allocation5 + $0x60] sm:$0xff] %v889
    %922 = vst [vmem:[#allocation5 + $0x68] sm:$0xff] %v890
    %923 = vst [vmem:[#allocation5 + $0x70] sm:$0xff] %v891
    %924 = vst [vmem:[#allocation5 + $0x78] sm:$0xff] %v892
    %925 = vst [vmem:[#allocation5 + $0x80] sm:$0xff] %v893
    %926 = vst [vmem:[#allocation5 + $0x88] sm:$0xff] %v894
    %927 = vst [vmem:[#allocation5 + $0x90] sm:$0xff] %v895
    %928 = vst [vmem:[#allocation5 + $0x98] sm:$0xff] %v896
    %929 = vst [vmem:[#allocation5 + $0xa0] sm:$0xff] %v897
    %930 = vst [vmem:[#allocation5 + $0xa8] sm:$0xff] %v898
    %931 = vst [vmem:[#allocation5 + $0xb0] sm:$0xff] %v899
    %932 = vst [vmem:[#allocation5 + $0xb8] sm:$0xff] %v900
    %933 = vst [vmem:[#allocation5 + $0xc0] sm:$0xff] %v901
    %934 = vst [vmem:[#allocation5 + $0xc8] sm:$0xff] %v902
    %935 = vst [vmem:[#allocation5 + $0xd0] sm:$0xff] %v903
    %936 = vst [vmem:[#allocation5 + $0xd8] sm:$0xff] %v904
    %937 = vst [vmem:[#allocation5 + $0xe0] sm:$0xff] %v905
    %938 = vst [vmem:[#allocation5 + $0xe8] sm:$0xff] %v906
    %939 = vst [vmem:[#allocation5 + $0xf0] sm:$0xff] %v907
    %940 = vst [vmem:[#allocation5 + $0xf8] sm:$0xff] %v908
    // Predicated region
    $region26: #{tpu_custom_call.1} parent=1 // pred_check
      _
    $region27: #{tpu_custom_call.1} parent=1 // pred_check_branch
      %942 = sbr.rel (0) target = $region29
    $region28: #{tpu_custom_call.1} parent=1 // pred_region
      %s944 = ssub.s32 4096, 4096
      %945 = vsyncadd [#allocation4], %s944
      %s946 = sshll.u32 [#allocation5], 4
      %s947 = int_to_ptr.vmem [resolvable:$true] %s946
      %952 = dma.vmem_to_hbm [thread:$0]  %s947, 4096, %s5, [#allocation4], 128, 128, 8
    $region29: #{tpu_custom_call.1} parent=1 // pred_fallthru
      _
    // Predicated region
    $region30: #{tpu_custom_call.1} parent=1 // pred_check
      _
    $region31: #{tpu_custom_call.1} parent=1 // pred_check_branch
      %954 = sbr.rel (0) target = $region33
    $region32: #{tpu_custom_call.1} parent=1 // pred_region
      %955 = dma.done [#allocation4], 4096
    $region33: #{tpu_custom_call.1} parent=1 // pred_fallthru
      _
    %956 = vsyncpa [#allocation3], 1
    %957 = vsyncpa [#allocation4], 1

</llo_original>
